<compile_context>
chip_gen: v6e
topology: v6e:2x2x1
jax: 0.10.0
libtpu: 0.0.40
codegen_flags: <defaults>
</compile_context>

<pallas_src>
import functools

import jax
import jax.numpy as jnp
from jax.experimental import pallas as pl
from jax.experimental.pallas import tpu as pltpu


def _decoder_kernel(T, B, E, H,
                    x_ref,      # (T*B, E)  bf16  gathered embeddings, time-major
                    w_ih_ref,   # (E, 4H)   bf16
                    w_hh_ref,   # (H, 4H)   bf16
                    b_ref,      # (1, 4H)   f32   (b_ih + b_hh)
                    w_po_ref,   # (H, H)    bf16
                    b_po_ref,   # (1, H)    f32
                    h0_ref,     # (B, H)    f32
                    c0_ref,     # (B, H)    f32
                    y_ref,      # out (T*B, H) f32
                    hn_ref,     # out (B, H)   f32
                    cn_ref,     # out (B, H)   f32
                    hseq_sc):   # scratch (T*B, H) f32
    # Time-parallel input projection: one MXU matmul for all timesteps at once,
    # bias broadcast/added once (hoisted out of the recurrence).
    gx = jnp.dot(x_ref[...], w_ih_ref[...],
                 preferred_element_type=jnp.float32) + b_ref[...]

    w_hh = w_hh_ref[...]
    h = h0_ref[...]
    c = c0_ref[...]

    # TODO(synk): nn.Dropout is treated as identity (eval/inference semantics).

    # Sequential LSTM recurrence, fully unrolled (T is small & static); h/c live in
    # vregs, only elementwise math in f32 + one tiny (B,H)x(H,4H) MXU matmul/step.
    for t in range(T):
        gates = gx[t * B:(t + 1) * B, :] + jnp.dot(
            h.astype(jnp.bfloat16), w_hh, preferred_element_type=jnp.float32)
        i = jax.nn.sigmoid(gates[:, 0 * H:1 * H])
        f = jax.nn.sigmoid(gates[:, 1 * H:2 * H])
        g = jnp.tanh(gates[:, 2 * H:3 * H])
        o = jax.nn.sigmoid(gates[:, 3 * H:4 * H])
        c = f * c + i * g
        h = o * jnp.tanh(c)
        hseq_sc[t * B:(t + 1) * B, :] = h

    hn_ref[...] = h
    cn_ref[...] = c

    # Fused pre_output for all timesteps: tanh(H_all @ W_po + b_po), single store.
    y_ref[...] = jnp.tanh(
        jnp.dot(hseq_sc[...].astype(jnp.bfloat16), w_po_ref[...],
                preferred_element_type=jnp.float32) + b_po_ref[...])


def decoder_forward(tokens, params, h_0=None, *, rng=None):
    """tokens: (B, T) int32.  Returns (y (B,T,H), (h_n (1,B,H), c_n (1,B,H)))."""
    emb, w_ih, w_hh, bias, w_po, b_po = (
        params["emb"], params["w_ih"], params["w_hh"],
        params["bias"], params["w_po"], params["b_po"])
    B, T = tokens.shape
    V, E = emb.shape
    H = w_hh.shape[0]

    if h_0 is None:
        if rng is None:
            rng = jax.random.PRNGKey(42)
        k1, k2 = jax.random.split(rng)
        h0 = jax.random.normal(k1, (B, H), jnp.float32)
        c0 = jax.random.normal(k2, (B, H), jnp.float32)
    elif isinstance(h_0, tuple):
        h0 = h_0[0].reshape(B, H)
        c0 = h_0[1].reshape(B, H)
    else:
        h0 = h_0.reshape(B, H)
        c0 = jnp.zeros_like(h0)

    # Embedding gather OUTSIDE the kernel: (B,T) -> (B,T,E) -> time-major (T*B, E).
    x = jnp.take(emb, tokens.astype(jnp.int32), axis=0)        # (B, T, E)
    x = jnp.transpose(x, (1, 0, 2)).reshape(T * B, E)          # (T*B, E) time-major
    x = x.astype(jnp.bfloat16)                                 # MXU operand dtype

    kernel = functools.partial(_decoder_kernel, T, B, E, H)
    vmem = pl.BlockSpec(memory_space=pltpu.MemorySpace.VMEM)

    y_flat, h_n, c_n = pl.pallas_call(
        kernel,
        out_shape=(
            jax.ShapeDtypeStruct((T * B, H), jnp.float32),
            jax.ShapeDtypeStruct((B, H), jnp.float32),
            jax.ShapeDtypeStruct((B, H), jnp.float32),
        ),
        in_specs=[vmem] * 8,
        out_specs=(vmem, vmem, vmem),
        scratch_shapes=[pltpu.VMEM((T * B, H), jnp.float32)],   # stacked hidden states
    )(x,
      w_ih.astype(jnp.bfloat16),
      w_hh.astype(jnp.bfloat16),
      bias,
      w_po.astype(jnp.bfloat16),
      b_po,
      h0, c0)

    y = jnp.transpose(y_flat.reshape(T, B, H), (1, 0, 2))      # (B, T, H) batch_first
    return y, (h_n[None], c_n[None])                           # h_n/c_n: (1, B, H)


def _decoder_ref(tokens, params, h0, c0):
    """Pure-JAX f32 reference (same math, no bf16), for a sanity check."""
    emb, w_ih, w_hh, bias, w_po, b_po = (
        params["emb"], params["w_ih"], params["w_hh"],
        params["bias"], params["w_po"], params["b_po"])
    H = w_hh.shape[0]
    x = emb[tokens]                                            # (B, T, E)

    def step(carry, x_t):
        h, c = carry
        gates = x_t @ w_ih + h @ w_hh + bias
        i = jax.nn.sigmoid(gates[:, 0 * H:1 * H])
        f = jax.nn.sigmoid(gates[:, 1 * H:2 * H])
        g = jnp.tanh(gates[:, 2 * H:3 * H])
        o = jax.nn.sigmoid(gates[:, 3 * H:4 * H])
        c = f * c + i * g
        h = o * jnp.tanh(c)
        return (h, c), h

    (h_n, c_n), hs = jax.lax.scan(step, (h0, c0), jnp.transpose(x, (1, 0, 2)))
    y = jnp.tanh(hs @ w_po + b_po)                             # (T, B, H)
    return jnp.transpose(y, (1, 0, 2)), h_n, c_n


def init_params(key, vocab_size, embed_dim, hidden_dim):
    ks = jax.random.split(key, 6)
    s = 0.1
    return {
        "emb":  s * jax.random.normal(ks[0], (vocab_size, embed_dim), jnp.float32),
        "w_ih": s * jax.random.normal(ks[1], (embed_dim, 4 * hidden_dim), jnp.float32),
        "w_hh": s * jax.random.normal(ks[2], (hidden_dim, 4 * hidden_dim), jnp.float32),
        "bias": s * jax.random.normal(ks[3], (1, 4 * hidden_dim), jnp.float32),
        "w_po": s * jax.random.normal(ks[4], (hidden_dim, hidden_dim), jnp.float32),
        "b_po": s * jax.random.normal(ks[5], (1, hidden_dim), jnp.float32),
    }


if __name__ == "__main__":
    # Small shapes consistent with the module: batch=2, seq=8, vocab=256,
    # embed_dim=32, hidden_dim=32.
    B, T = 2, 8
    VOCAB, EMBED, HIDDEN = 256, 32, 32

    key = jax.random.PRNGKey(0)
    k_params, k_tok, k_state = jax.random.split(key, 3)

    params = init_params(k_params, VOCAB, EMBED, HIDDEN)
    tokens = jax.random.randint(k_tok, (B, T), 0, VOCAB, dtype=jnp.int32)

    # h_0=None branch (random initial state, like torch.randn in forward)
    y, (h_n, c_n) = decoder_forward(tokens, params, h_0=None, rng=k_state)
    jax.block_until_ready((y, h_n, c_n))
    assert y.shape == (B, T, HIDDEN)
    assert h_n.shape == (1, B, HIDDEN) and c_n.shape == (1, B, HIDDEN)

    # explicit h_0 tuple branch + numeric sanity check vs pure-JAX f32 reference
    h0 = jnp.zeros((1, B, HIDDEN), jnp.float32)
    c0 = jnp.zeros((1, B, HIDDEN), jnp.float32)
    y2, (h_n2, c_n2) = decoder_forward(tokens, params, h_0=(h0, c0))
    jax.block_until_ready((y2, h_n2, c_n2))

    y_ref, h_ref, c_ref = _decoder_ref(tokens, params,
                                       h0.reshape(B, HIDDEN), c0.reshape(B, HIDDEN))
    assert float(jnp.max(jnp.abs(y2 - y_ref))) < 0.1          # bf16-matmul tolerance
    assert float(jnp.max(jnp.abs(h_n2[0] - h_ref))) < 0.1
    assert float(jnp.max(jnp.abs(c_n2[0] - c_ref))) < 0.1

    print("KERNEL_OK")
</pallas_src>

<mosaic_0001>
module attributes {stable_mosaic.version = 11 : i64} {
  func.func @_decoder_kernel(%arg0: memref<16x32xbf16, #tpu.memory_space<vmem>>, %arg1: memref<32x128xbf16, #tpu.memory_space<vmem>>, %arg2: memref<32x128xbf16, #tpu.memory_space<vmem>>, %arg3: memref<1x128xf32, #tpu.memory_space<vmem>>, %arg4: memref<32x32xbf16, #tpu.memory_space<vmem>>, %arg5: memref<1x32xf32, #tpu.memory_space<vmem>>, %arg6: memref<2x32xf32, #tpu.memory_space<vmem>>, %arg7: memref<2x32xf32, #tpu.memory_space<vmem>>, %arg8: memref<16x32xf32, #tpu.memory_space<vmem>>, %arg9: memref<2x32xf32, #tpu.memory_space<vmem>>, %arg10: memref<2x32xf32, #tpu.memory_space<vmem>>, %arg11: memref<16x32xf32, #tpu.memory_space<vmem>>) attributes {dimension_semantics = [], scalar_prefetch = 0 : i64, scratch_operands = 1 : i64, tpu.core_type = #tpu.core_type<tc>} {
    %c0 = arith.constant 0 : index
    %c0_0 = arith.constant 0 : index
    %0 = vector.load %arg0[%c0, %c0_0] : memref<16x32xbf16, #tpu.memory_space<vmem>>, vector<16x32xbf16>
    %c0_1 = arith.constant 0 : index
    %c0_2 = arith.constant 0 : index
    %1 = vector.load %arg1[%c0_1, %c0_2] : memref<32x128xbf16, #tpu.memory_space<vmem>>, vector<32x128xbf16>
    %cst = arith.constant dense<0.000000e+00> : vector<16x128xf32>
    %2 = tpu.matmul %0, %1, %cst {dimension_numbers = #tpu.dot_dimension_numbers<[1], [0], [0], [1], [0, 0, 1, 1], [], []>} : vector<16x32xbf16>, vector<32x128xbf16>, vector<16x128xf32> -> vector<16x128xf32>
    %c0_3 = arith.constant 0 : index
    %c0_4 = arith.constant 0 : index
    %3 = vector.load %arg3[%c0_3, %c0_4] : memref<1x128xf32, #tpu.memory_space<vmem>>, vector<1x128xf32>
    %4 = vector.broadcast %3 : vector<1x128xf32> to vector<16x128xf32>
    %5 = arith.addf %2, %4 : vector<16x128xf32>
    %c0_5 = arith.constant 0 : index
    %c0_6 = arith.constant 0 : index
    %6 = vector.load %arg2[%c0_5, %c0_6] : memref<32x128xbf16, #tpu.memory_space<vmem>>, vector<32x128xbf16>
    %c0_7 = arith.constant 0 : index
    %c0_8 = arith.constant 0 : index
    %7 = vector.load %arg6[%c0_7, %c0_8] : memref<2x32xf32, #tpu.memory_space<vmem>>, vector<2x32xf32>
    %c0_9 = arith.constant 0 : index
    %c0_10 = arith.constant 0 : index
    %8 = vector.load %arg7[%c0_9, %c0_10] : memref<2x32xf32, #tpu.memory_space<vmem>>, vector<2x32xf32>
    %9 = vector.extract_strided_slice %5 {offsets = [0, 0], sizes = [2, 128], strides = [1, 1]} : vector<16x128xf32> to vector<2x128xf32>
    %10 = arith.truncf %7 : vector<2x32xf32> to vector<2x32xbf16>
    %cst_11 = arith.constant dense<0.000000e+00> : vector<2x128xf32>
    %11 = tpu.matmul %10, %6, %cst_11 {dimension_numbers = #tpu.dot_dimension_numbers<[1], [0], [0], [1], [0, 0, 1, 1], [], []>} : vector<2x32xbf16>, vector<32x128xbf16>, vector<2x128xf32> -> vector<2x128xf32>
    %12 = arith.addf %9, %11 : vector<2x128xf32>
    %13 = vector.extract_strided_slice %12 {offsets = [0, 0], sizes = [2, 32], strides = [1, 1]} : vector<2x128xf32> to vector<2x32xf32>
    %14 = arith.negf %13 : vector<2x32xf32>
    %15 = math.exp %14 : vector<2x32xf32>
    %cst_12 = arith.constant 1.000000e+00 : f32
    %16 = vector.broadcast %cst_12 : f32 to vector<2x32xf32>
    %17 = arith.addf %16, %15 : vector<2x32xf32>
    %18 = arith.divf %16, %17 : vector<2x32xf32>
    %19 = vector.extract_strided_slice %12 {offsets = [0, 32], sizes = [2, 32], strides = [1, 1]} : vector<2x128xf32> to vector<2x32xf32>
    %20 = arith.negf %19 : vector<2x32xf32>
    %21 = math.exp %20 : vector<2x32xf32>
    %cst_13 = arith.constant 1.000000e+00 : f32
    %22 = vector.broadcast %cst_13 : f32 to vector<2x32xf32>
    %23 = arith.addf %22, %21 : vector<2x32xf32>
    %24 = arith.divf %22, %23 : vector<2x32xf32>
    %25 = vector.extract_strided_slice %12 {offsets = [0, 64], sizes = [2, 32], strides = [1, 1]} : vector<2x128xf32> to vector<2x32xf32>
    %26 = math.tanh %25 : vector<2x32xf32>
    %27 = vector.extract_strided_slice %12 {offsets = [0, 96], sizes = [2, 32], strides = [1, 1]} : vector<2x128xf32> to vector<2x32xf32>
    %28 = arith.negf %27 : vector<2x32xf32>
    %29 = math.exp %28 : vector<2x32xf32>
    %cst_14 = arith.constant 1.000000e+00 : f32
    %30 = vector.broadcast %cst_14 : f32 to vector<2x32xf32>
    %31 = arith.addf %30, %29 : vector<2x32xf32>
    %32 = arith.divf %30, %31 : vector<2x32xf32>
    %33 = arith.mulf %24, %8 : vector<2x32xf32>
    %34 = arith.mulf %18, %26 : vector<2x32xf32>
    %35 = arith.addf %33, %34 : vector<2x32xf32>
    %36 = math.tanh %35 : vector<2x32xf32>
    %37 = arith.mulf %32, %36 : vector<2x32xf32>
    %c0_15 = arith.constant 0 : index
    %c0_16 = arith.constant 0 : index
    %38 = vector.load %arg11[%c0_15, %c0_16] : memref<16x32xf32, #tpu.memory_space<vmem>>, vector<2x32xf32>
    tpu.vector_store %arg11[%c0_15, %c0_16], %37 {strides = array<i32>} : memref<16x32xf32, #tpu.memory_space<vmem>>, vector<2x32xf32>,
    %39 = vector.extract_strided_slice %5 {offsets = [2, 0], sizes = [2, 128], strides = [1, 1]} : vector<16x128xf32> to vector<2x128xf32>
    %40 = arith.truncf %37 : vector<2x32xf32> to vector<2x32xbf16>
    %cst_17 = arith.constant dense<0.000000e+00> : vector<2x128xf32>
    %41 = tpu.matmul %40, %6, %cst_17 {dimension_numbers = #tpu.dot_dimension_numbers<[1], [0], [0], [1], [0, 0, 1, 1], [], []>} : vector<2x32xbf16>, vector<32x128xbf16>, vector<2x128xf32> -> vector<2x128xf32>
    %42 = arith.addf %39, %41 : vector<2x128xf32>
    %43 = vector.extract_strided_slice %42 {offsets = [0, 0], sizes = [2, 32], strides = [1, 1]} : vector<2x128xf32> to vector<2x32xf32>
    %44 = arith.negf %43 : vector<2x32xf32>
    %45 = math.exp %44 : vector<2x32xf32>
    %cst_18 = arith.constant 1.000000e+00 : f32
    %46 = vector.broadcast %cst_18 : f32 to vector<2x32xf32>
    %47 = arith.addf %46, %45 : vector<2x32xf32>
    %48 = arith.divf %46, %47 : vector<2x32xf32>
    %49 = vector.extract_strided_slice %42 {offsets = [0, 32], sizes = [2, 32], strides = [1, 1]} : vector<2x128xf32> to vector<2x32xf32>
    %50 = arith.negf %49 : vector<2x32xf32>
    %51 = math.exp %50 : vector<2x32xf32>
    %cst_19 = arith.constant 1.000000e+00 : f32
    %52 = vector.broadcast %cst_19 : f32 to vector<2x32xf32>
    %53 = arith.addf %52, %51 : vector<2x32xf32>
    %54 = arith.divf %52, %53 : vector<2x32xf32>
    %55 = vector.extract_strided_slice %42 {offsets = [0, 64], sizes = [2, 32], strides = [1, 1]} : vector<2x128xf32> to vector<2x32xf32>
    %56 = math.tanh %55 : vector<2x32xf32>
    %57 = vector.extract_strided_slice %42 {offsets = [0, 96], sizes = [2, 32], strides = [1, 1]} : vector<2x128xf32> to vector<2x32xf32>
    %58 = arith.negf %57 : vector<2x32xf32>
    %59 = math.exp %58 : vector<2x32xf32>
    %cst_20 = arith.constant 1.000000e+00 : f32
    %60 = vector.broadcast %cst_20 : f32 to vector<2x32xf32>
    %61 = arith.addf %60, %59 : vector<2x32xf32>
    %62 = arith.divf %60, %61 : vector<2x32xf32>
    %63 = arith.mulf %54, %35 : vector<2x32xf32>
    %64 = arith.mulf %48, %56 : vector<2x32xf32>
    %65 = arith.addf %63, %64 : vector<2x32xf32>
    %66 = math.tanh %65 : vector<2x32xf32>
    %67 = arith.mulf %62, %66 : vector<2x32xf32>
    %c2 = arith.constant 2 : index
    %c0_21 = arith.constant 0 : index
    %68 = vector.load %arg11[%c2, %c0_21] : memref<16x32xf32, #tpu.memory_space<vmem>>, vector<2x32xf32>
    tpu.vector_store %arg11[%c2, %c0_21], %67 {strides = array<i32>} : memref<16x32xf32, #tpu.memory_space<vmem>>, vector<2x32xf32>,
    %69 = vector.extract_strided_slice %5 {offsets = [4, 0], sizes = [2, 128], strides = [1, 1]} : vector<16x128xf32> to vector<2x128xf32>
    %70 = arith.truncf %67 : vector<2x32xf32> to vector<2x32xbf16>
    %cst_22 = arith.constant dense<0.000000e+00> : vector<2x128xf32>
    %71 = tpu.matmul %70, %6, %cst_22 {dimension_numbers = #tpu.dot_dimension_numbers<[1], [0], [0], [1], [0, 0, 1, 1], [], []>} : vector<2x32xbf16>, vector<32x128xbf16>, vector<2x128xf32> -> vector<2x128xf32>
    %72 = arith.addf %69, %71 : vector<2x128xf32>
    %73 = vector.extract_strided_slice %72 {offsets = [0, 0], sizes = [2, 32], strides = [1, 1]} : vector<2x128xf32> to vector<2x32xf32>
    %74 = arith.negf %73 : vector<2x32xf32>
    %75 = math.exp %74 : vector<2x32xf32>
    %cst_23 = arith.constant 1.000000e+00 : f32
    %76 = vector.broadcast %cst_23 : f32 to vector<2x32xf32>
    %77 = arith.addf %76, %75 : vector<2x32xf32>
    %78 = arith.divf %76, %77 : vector<2x32xf32>
    %79 = vector.extract_strided_slice %72 {offsets = [0, 32], sizes = [2, 32], strides = [1, 1]} : vector<2x128xf32> to vector<2x32xf32>
    %80 = arith.negf %79 : vector<2x32xf32>
    %81 = math.exp %80 : vector<2x32xf32>
    %cst_24 = arith.constant 1.000000e+00 : f32
    %82 = vector.broadcast %cst_24 : f32 to vector<2x32xf32>
    %83 = arith.addf %82, %81 : vector<2x32xf32>
    %84 = arith.divf %82, %83 : vector<2x32xf32>
    %85 = vector.extract_strided_slice %72 {offsets = [0, 64], sizes = [2, 32], strides = [1, 1]} : vector<2x128xf32> to vector<2x32xf32>
    %86 = math.tanh %85 : vector<2x32xf32>
    %87 = vector.extract_strided_slice %72 {offsets = [0, 96], sizes = [2, 32], strides = [1, 1]} : vector<2x128xf32> to vector<2x32xf32>
    %88 = arith.negf %87 : vector<2x32xf32>
    %89 = math.exp %88 : vector<2x32xf32>
    %cst_25 = arith.constant 1.000000e+00 : f32
    %90 = vector.broadcast %cst_25 : f32 to vector<2x32xf32>
    %91 = arith.addf %90, %89 : vector<2x32xf32>
    %92 = arith.divf %90, %91 : vector<2x32xf32>
    %93 = arith.mulf %84, %65 : vector<2x32xf32>
    %94 = arith.mulf %78, %86 : vector<2x32xf32>
    %95 = arith.addf %93, %94 : vector<2x32xf32>
    %96 = math.tanh %95 : vector<2x32xf32>
    %97 = arith.mulf %92, %96 : vector<2x32xf32>
    %c4 = arith.constant 4 : index
    %c0_26 = arith.constant 0 : index
    %98 = vector.load %arg11[%c4, %c0_26] : memref<16x32xf32, #tpu.memory_space<vmem>>, vector<2x32xf32>
    tpu.vector_store %arg11[%c4, %c0_26], %97 {strides = array<i32>} : memref<16x32xf32, #tpu.memory_space<vmem>>, vector<2x32xf32>,
    %99 = vector.extract_strided_slice %5 {offsets = [6, 0], sizes = [2, 128], strides = [1, 1]} : vector<16x128xf32> to vector<2x128xf32>
    %100 = arith.truncf %97 : vector<2x32xf32> to vector<2x32xbf16>
    %cst_27 = arith.constant dense<0.000000e+00> : vector<2x128xf32>
    %101 = tpu.matmul %100, %6, %cst_27 {dimension_numbers = #tpu.dot_dimension_numbers<[1], [0], [0], [1], [0, 0, 1, 1], [], []>} : vector<2x32xbf16>, vector<32x128xbf16>, vector<2x128xf32> -> vector<2x128xf32>
    %102 = arith.addf %99, %101 : vector<2x128xf32>
    %103 = vector.extract_strided_slice %102 {offsets = [0, 0], sizes = [2, 32], strides = [1, 1]} : vector<2x128xf32> to vector<2x32xf32>
    %104 = arith.negf %103 : vector<2x32xf32>
    %105 = math.exp %104 : vector<2x32xf32>
    %cst_28 = arith.constant 1.000000e+00 : f32
    %106 = vector.broadcast %cst_28 : f32 to vector<2x32xf32>
    %107 = arith.addf %106, %105 : vector<2x32xf32>
    %108 = arith.divf %106, %107 : vector<2x32xf32>
    %109 = vector.extract_strided_slice %102 {offsets = [0, 32], sizes = [2, 32], strides = [1, 1]} : vector<2x128xf32> to vector<2x32xf32>
    %110 = arith.negf %109 : vector<2x32xf32>
    %111 = math.exp %110 : vector<2x32xf32>
    %cst_29 = arith.constant 1.000000e+00 : f32
    %112 = vector.broadcast %cst_29 : f32 to vector<2x32xf32>
    %113 = arith.addf %112, %111 : vector<2x32xf32>
    %114 = arith.divf %112, %113 : vector<2x32xf32>
    %115 = vector.extract_strided_slice %102 {offsets = [0, 64], sizes = [2, 32], strides = [1, 1]} : vector<2x128xf32> to vector<2x32xf32>
    %116 = math.tanh %115 : vector<2x32xf32>
    %117 = vector.extract_strided_slice %102 {offsets = [0, 96], sizes = [2, 32], strides = [1, 1]} : vector<2x128xf32> to vector<2x32xf32>
    %118 = arith.negf %117 : vector<2x32xf32>
    %119 = math.exp %118 : vector<2x32xf32>
    %cst_30 = arith.constant 1.000000e+00 : f32
    %120 = vector.broadcast %cst_30 : f32 to vector<2x32xf32>
    %121 = arith.addf %120, %119 : vector<2x32xf32>
    %122 = arith.divf %120, %121 : vector<2x32xf32>
    %123 = arith.mulf %114, %95 : vector<2x32xf32>
    %124 = arith.mulf %108, %116 : vector<2x32xf32>
    %125 = arith.addf %123, %124 : vector<2x32xf32>
    %126 = math.tanh %125 : vector<2x32xf32>
    %127 = arith.mulf %122, %126 : vector<2x32xf32>
    %c6 = arith.constant 6 : index
    %c0_31 = arith.constant 0 : index
    %128 = vector.load %arg11[%c6, %c0_31] : memref<16x32xf32, #tpu.memory_space<vmem>>, vector<2x32xf32>
    tpu.vector_store %arg11[%c6, %c0_31], %127 {strides = array<i32>} : memref<16x32xf32, #tpu.memory_space<vmem>>, vector<2x32xf32>,
    %129 = vector.extract_strided_slice %5 {offsets = [8, 0], sizes = [2, 128], strides = [1, 1]} : vector<16x128xf32> to vector<2x128xf32>
    %130 = arith.truncf %127 : vector<2x32xf32> to vector<2x32xbf16>
    %cst_32 = arith.constant dense<0.000000e+00> : vector<2x128xf32>
    %131 = tpu.matmul %130, %6, %cst_32 {dimension_numbers = #tpu.dot_dimension_numbers<[1], [0], [0], [1], [0, 0, 1, 1], [], []>} : vector<2x32xbf16>, vector<32x128xbf16>, vector<2x128xf32> -> vector<2x128xf32>
    %132 = arith.addf %129, %131 : vector<2x128xf32>
    %133 = vector.extract_strided_slice %132 {offsets = [0, 0], sizes = [2, 32], strides = [1, 1]} : vector<2x128xf32> to vector<2x32xf32>
    %134 = arith.negf %133 : vector<2x32xf32>
    %135 = math.exp %134 : vector<2x32xf32>
    %cst_33 = arith.constant 1.000000e+00 : f32
    %136 = vector.broadcast %cst_33 : f32 to vector<2x32xf32>
    %137 = arith.addf %136, %135 : vector<2x32xf32>
    %138 = arith.divf %136, %137 : vector<2x32xf32>
    %139 = vector.extract_strided_slice %132 {offsets = [0, 32], sizes = [2, 32], strides = [1, 1]} : vector<2x128xf32> to vector<2x32xf32>
    %140 = arith.negf %139 : vector<2x32xf32>
    %141 = math.exp %140 : vector<2x32xf32>
    %cst_34 = arith.constant 1.000000e+00 : f32
    %142 = vector.broadcast %cst_34 : f32 to vector<2x32xf32>
    %143 = arith.addf %142, %141 : vector<2x32xf32>
    %144 = arith.divf %142, %143 : vector<2x32xf32>
    %145 = vector.extract_strided_slice %132 {offsets = [0, 64], sizes = [2, 32], strides = [1, 1]} : vector<2x128xf32> to vector<2x32xf32>
    %146 = math.tanh %145 : vector<2x32xf32>
    %147 = vector.extract_strided_slice %132 {offsets = [0, 96], sizes = [2, 32], strides = [1, 1]} : vector<2x128xf32> to vector<2x32xf32>
    %148 = arith.negf %147 : vector<2x32xf32>
    %149 = math.exp %148 : vector<2x32xf32>
    %cst_35 = arith.constant 1.000000e+00 : f32
    %150 = vector.broadcast %cst_35 : f32 to vector<2x32xf32>
    %151 = arith.addf %150, %149 : vector<2x32xf32>
    %152 = arith.divf %150, %151 : vector<2x32xf32>
    %153 = arith.mulf %144, %125 : vector<2x32xf32>
    %154 = arith.mulf %138, %146 : vector<2x32xf32>
    %155 = arith.addf %153, %154 : vector<2x32xf32>
    %156 = math.tanh %155 : vector<2x32xf32>
    %157 = arith.mulf %152, %156 : vector<2x32xf32>
    %c8 = arith.constant 8 : index
    %c0_36 = arith.constant 0 : index
    %158 = vector.load %arg11[%c8, %c0_36] : memref<16x32xf32, #tpu.memory_space<vmem>>, vector<2x32xf32>
    tpu.vector_store %arg11[%c8, %c0_36], %157 {strides = array<i32>} : memref<16x32xf32, #tpu.memory_space<vmem>>, vector<2x32xf32>,
    %159 = vector.extract_strided_slice %5 {offsets = [10, 0], sizes = [2, 128], strides = [1, 1]} : vector<16x128xf32> to vector<2x128xf32>
    %160 = arith.truncf %157 : vector<2x32xf32> to vector<2x32xbf16>
    %cst_37 = arith.constant dense<0.000000e+00> : vector<2x128xf32>
    %161 = tpu.matmul %160, %6, %cst_37 {dimension_numbers = #tpu.dot_dimension_numbers<[1], [0], [0], [1], [0, 0, 1, 1], [], []>} : vector<2x32xbf16>, vector<32x128xbf16>, vector<2x128xf32> -> vector<2x128xf32>
    %162 = arith.addf %159, %161 : vector<2x128xf32>
    %163 = vector.extract_strided_slice %162 {offsets = [0, 0], sizes = [2, 32], strides = [1, 1]} : vector<2x128xf32> to vector<2x32xf32>
    %164 = arith.negf %163 : vector<2x32xf32>
    %165 = math.exp %164 : vector<2x32xf32>
    %cst_38 = arith.constant 1.000000e+00 : f32
    %166 = vector.broadcast %cst_38 : f32 to vector<2x32xf32>
    %167 = arith.addf %166, %165 : vector<2x32xf32>
    %168 = arith.divf %166, %167 : vector<2x32xf32>
    %169 = vector.extract_strided_slice %162 {offsets = [0, 32], sizes = [2, 32], strides = [1, 1]} : vector<2x128xf32> to vector<2x32xf32>
    %170 = arith.negf %169 : vector<2x32xf32>
    %171 = math.exp %170 : vector<2x32xf32>
    %cst_39 = arith.constant 1.000000e+00 : f32
    %172 = vector.broadcast %cst_39 : f32 to vector<2x32xf32>
    %173 = arith.addf %172, %171 : vector<2x32xf32>
    %174 = arith.divf %172, %173 : vector<2x32xf32>
    %175 = vector.extract_strided_slice %162 {offsets = [0, 64], sizes = [2, 32], strides = [1, 1]} : vector<2x128xf32> to vector<2x32xf32>
    %176 = math.tanh %175 : vector<2x32xf32>
    %177 = vector.extract_strided_slice %162 {offsets = [0, 96], sizes = [2, 32], strides = [1, 1]} : vector<2x128xf32> to vector<2x32xf32>
    %178 = arith.negf %177 : vector<2x32xf32>
    %179 = math.exp %178 : vector<2x32xf32>
    %cst_40 = arith.constant 1.000000e+00 : f32
    %180 = vector.broadcast %cst_40 : f32 to vector<2x32xf32>
    %181 = arith.addf %180, %179 : vector<2x32xf32>
    %182 = arith.divf %180, %181 : vector<2x32xf32>
    %183 = arith.mulf %174, %155 : vector<2x32xf32>
    %184 = arith.mulf %168, %176 : vector<2x32xf32>
    %185 = arith.addf %183, %184 : vector<2x32xf32>
    %186 = math.tanh %185 : vector<2x32xf32>
    %187 = arith.mulf %182, %186 : vector<2x32xf32>
    %c10 = arith.constant 10 : index
    %c0_41 = arith.constant 0 : index
    %188 = vector.load %arg11[%c10, %c0_41] : memref<16x32xf32, #tpu.memory_space<vmem>>, vector<2x32xf32>
    tpu.vector_store %arg11[%c10, %c0_41], %187 {strides = array<i32>} : memref<16x32xf32, #tpu.memory_space<vmem>>, vector<2x32xf32>,
    %189 = vector.extract_strided_slice %5 {offsets = [12, 0], sizes = [2, 128], strides = [1, 1]} : vector<16x128xf32> to vector<2x128xf32>
    %190 = arith.truncf %187 : vector<2x32xf32> to vector<2x32xbf16>
    %cst_42 = arith.constant dense<0.000000e+00> : vector<2x128xf32>
    %191 = tpu.matmul %190, %6, %cst_42 {dimension_numbers = #tpu.dot_dimension_numbers<[1], [0], [0], [1], [0, 0, 1, 1], [], []>} : vector<2x32xbf16>, vector<32x128xbf16>, vector<2x128xf32> -> vector<2x128xf32>
    %192 = arith.addf %189, %191 : vector<2x128xf32>
    %193 = vector.extract_strided_slice %192 {offsets = [0, 0], sizes = [2, 32], strides = [1, 1]} : vector<2x128xf32> to vector<2x32xf32>
    %194 = arith.negf %193 : vector<2x32xf32>
    %195 = math.exp %194 : vector<2x32xf32>
    %cst_43 = arith.constant 1.000000e+00 : f32
    %196 = vector.broadcast %cst_43 : f32 to vector<2x32xf32>
    %197 = arith.addf %196, %195 : vector<2x32xf32>
    %198 = arith.divf %196, %197 : vector<2x32xf32>
    %199 = vector.extract_strided_slice %192 {offsets = [0, 32], sizes = [2, 32], strides = [1, 1]} : vector<2x128xf32> to vector<2x32xf32>
    %200 = arith.negf %199 : vector<2x32xf32>
    %201 = math.exp %200 : vector<2x32xf32>
    %cst_44 = arith.constant 1.000000e+00 : f32
    %202 = vector.broadcast %cst_44 : f32 to vector<2x32xf32>
    %203 = arith.addf %202, %201 : vector<2x32xf32>
    %204 = arith.divf %202, %203 : vector<2x32xf32>
    %205 = vector.extract_strided_slice %192 {offsets = [0, 64], sizes = [2, 32], strides = [1, 1]} : vector<2x128xf32> to vector<2x32xf32>
    %206 = math.tanh %205 : vector<2x32xf32>
    %207 = vector.extract_strided_slice %192 {offsets = [0, 96], sizes = [2, 32], strides = [1, 1]} : vector<2x128xf32> to vector<2x32xf32>
    %208 = arith.negf %207 : vector<2x32xf32>
    %209 = math.exp %208 : vector<2x32xf32>
    %cst_45 = arith.constant 1.000000e+00 : f32
    %210 = vector.broadcast %cst_45 : f32 to vector<2x32xf32>
    %211 = arith.addf %210, %209 : vector<2x32xf32>
    %212 = arith.divf %210, %211 : vector<2x32xf32>
    %213 = arith.mulf %204, %185 : vector<2x32xf32>
    %214 = arith.mulf %198, %206 : vector<2x32xf32>
    %215 = arith.addf %213, %214 : vector<2x32xf32>
    %216 = math.tanh %215 : vector<2x32xf32>
    %217 = arith.mulf %212, %216 : vector<2x32xf32>
    %c12 = arith.constant 12 : index
    %c0_46 = arith.constant 0 : index
    %218 = vector.load %arg11[%c12, %c0_46] : memref<16x32xf32, #tpu.memory_space<vmem>>, vector<2x32xf32>
    tpu.vector_store %arg11[%c12, %c0_46], %217 {strides = array<i32>} : memref<16x32xf32, #tpu.memory_space<vmem>>, vector<2x32xf32>,
    %219 = vector.extract_strided_slice %5 {offsets = [14, 0], sizes = [2, 128], strides = [1, 1]} : vector<16x128xf32> to vector<2x128xf32>
    %220 = arith.truncf %217 : vector<2x32xf32> to vector<2x32xbf16>
    %cst_47 = arith.constant dense<0.000000e+00> : vector<2x128xf32>
    %221 = tpu.matmul %220, %6, %cst_47 {dimension_numbers = #tpu.dot_dimension_numbers<[1], [0], [0], [1], [0, 0, 1, 1], [], []>} : vector<2x32xbf16>, vector<32x128xbf16>, vector<2x128xf32> -> vector<2x128xf32>
    %222 = arith.addf %219, %221 : vector<2x128xf32>
    %223 = vector.extract_strided_slice %222 {offsets = [0, 0], sizes = [2, 32], strides = [1, 1]} : vector<2x128xf32> to vector<2x32xf32>
    %224 = arith.negf %223 : vector<2x32xf32>
    %225 = math.exp %224 : vector<2x32xf32>
    %cst_48 = arith.constant 1.000000e+00 : f32
    %226 = vector.broadcast %cst_48 : f32 to vector<2x32xf32>
    %227 = arith.addf %226, %225 : vector<2x32xf32>
    %228 = arith.divf %226, %227 : vector<2x32xf32>
    %229 = vector.extract_strided_slice %222 {offsets = [0, 32], sizes = [2, 32], strides = [1, 1]} : vector<2x128xf32> to vector<2x32xf32>
    %230 = arith.negf %229 : vector<2x32xf32>
    %231 = math.exp %230 : vector<2x32xf32>
    %cst_49 = arith.constant 1.000000e+00 : f32
    %232 = vector.broadcast %cst_49 : f32 to vector<2x32xf32>
    %233 = arith.addf %232, %231 : vector<2x32xf32>
    %234 = arith.divf %232, %233 : vector<2x32xf32>
    %235 = vector.extract_strided_slice %222 {offsets = [0, 64], sizes = [2, 32], strides = [1, 1]} : vector<2x128xf32> to vector<2x32xf32>
    %236 = math.tanh %235 : vector<2x32xf32>
    %237 = vector.extract_strided_slice %222 {offsets = [0, 96], sizes = [2, 32], strides = [1, 1]} : vector<2x128xf32> to vector<2x32xf32>
    %238 = arith.negf %237 : vector<2x32xf32>
    %239 = math.exp %238 : vector<2x32xf32>
    %cst_50 = arith.constant 1.000000e+00 : f32
    %240 = vector.broadcast %cst_50 : f32 to vector<2x32xf32>
    %241 = arith.addf %240, %239 : vector<2x32xf32>
    %242 = arith.divf %240, %241 : vector<2x32xf32>
    %243 = arith.mulf %234, %215 : vector<2x32xf32>
    %244 = arith.mulf %228, %236 : vector<2x32xf32>
    %245 = arith.addf %243, %244 : vector<2x32xf32>
    %246 = math.tanh %245 : vector<2x32xf32>
    %247 = arith.mulf %242, %246 : vector<2x32xf32>
    %c14 = arith.constant 14 : index
    %c0_51 = arith.constant 0 : index
    %248 = vector.load %arg11[%c14, %c0_51] : memref<16x32xf32, #tpu.memory_space<vmem>>, vector<2x32xf32>
    tpu.vector_store %arg11[%c14, %c0_51], %247 {strides = array<i32>} : memref<16x32xf32, #tpu.memory_space<vmem>>, vector<2x32xf32>,
    %c0_52 = arith.constant 0 : index
    %c0_53 = arith.constant 0 : index
    %249 = vector.load %arg9[%c0_52, %c0_53] : memref<2x32xf32, #tpu.memory_space<vmem>>, vector<2x32xf32>
    tpu.vector_store %arg9[%c0_52, %c0_53], %247 {strides = array<i32>} : memref<2x32xf32, #tpu.memory_space<vmem>>, vector<2x32xf32>,
    %c0_54 = arith.constant 0 : index
    %c0_55 = arith.constant 0 : index
    %250 = vector.load %arg10[%c0_54, %c0_55] : memref<2x32xf32, #tpu.memory_space<vmem>>, vector<2x32xf32>
    tpu.vector_store %arg10[%c0_54, %c0_55], %245 {strides = array<i32>} : memref<2x32xf32, #tpu.memory_space<vmem>>, vector<2x32xf32>,
    %c0_56 = arith.constant 0 : index
    %c0_57 = arith.constant 0 : index
    %251 = vector.load %arg11[%c0_56, %c0_57] : memref<16x32xf32, #tpu.memory_space<vmem>>, vector<16x32xf32>
    %252 = arith.truncf %251 : vector<16x32xf32> to vector<16x32xbf16>
    %c0_58 = arith.constant 0 : index
    %c0_59 = arith.constant 0 : index
    %253 = vector.load %arg4[%c0_58, %c0_59] : memref<32x32xbf16, #tpu.memory_space<vmem>>, vector<32x32xbf16>
    %cst_60 = arith.constant dense<0.000000e+00> : vector<16x32xf32>
    %254 = tpu.matmul %252, %253, %cst_60 {dimension_numbers = #tpu.dot_dimension_numbers<[1], [0], [0], [1], [0, 0, 1, 1], [], []>} : vector<16x32xbf16>, vector<32x32xbf16>, vector<16x32xf32> -> vector<16x32xf32>
    %c0_61 = arith.constant 0 : index
    %c0_62 = arith.constant 0 : index
    %255 = vector.load %arg5[%c0_61, %c0_62] : memref<1x32xf32, #tpu.memory_space<vmem>>, vector<1x32xf32>
    %256 = vector.broadcast %255 : vector<1x32xf32> to vector<16x32xf32>
    %257 = arith.addf %254, %256 : vector<16x32xf32>
    %258 = math.tanh %257 : vector<16x32xf32>
    %c0_63 = arith.constant 0 : index
    %c0_64 = arith.constant 0 : index
    %259 = vector.load %arg8[%c0_63, %c0_64] : memref<16x32xf32, #tpu.memory_space<vmem>>, vector<16x32xf32>
    tpu.vector_store %arg8[%c0_63, %c0_64], %258 {strides = array<i32>} : memref<16x32xf32, #tpu.memory_space<vmem>>, vector<16x32xf32>,
    return
  }
}

</mosaic_0001>

<llo_original>
// kernel: tpu_custom_call.1
$region0: #{tpu_custom_call.1}
  #allocation0 [shape = 'u32[]', space=smem, size = 0x4, offset = 0x4, fixed_abs, tag = 'smem constant byte address 0x4 - core index']
  #allocation1 [shape = 'u32[144,128]{1,0:T(1,128)}', space=vmem, size = 0x12000, scoped, tag = 'internal scratch']
  #allocation2 [shape = 'f32[16,32]{1,0:T(8,128)}', space=vmem, size = 0x2000, scoped, tag = 'scratch operand']
  %s0 = inlined_call_operand.hbm [shape: bf16[16,32], index: 0, kind: input, shape index: {}]
  %s1 = inlined_call_operand.hbm [shape: bf16[32,128], index: 1, kind: input, shape index: {}]
  %s2 = inlined_call_operand.hbm [shape: bf16[32,128], index: 2, kind: input, shape index: {}]
  %s3 = inlined_call_operand.vmem [shape: f32[1,128], index: 3, kind: input, shape index: {}]
  %s4 = inlined_call_operand.hbm [shape: bf16[32,32], index: 4, kind: input, shape index: {}]
  %s5 = inlined_call_operand.vmem [shape: f32[1,32], index: 5, kind: input, shape index: {}]
  %s6 = inlined_call_operand.vmem [shape: f32[2,32], index: 6, kind: input, shape index: {}]
  %s7 = inlined_call_operand.vmem [shape: f32[2,32], index: 7, kind: input, shape index: {}]
  %s8 = inlined_call_operand.hbm [shape: f32[16,32], index: 8, kind: output, shape index: {0}]
  %s9 = inlined_call_operand.hbm [shape: f32[2,32], index: 9, kind: output, shape index: {1}]
  %s10 = inlined_call_operand.hbm [shape: f32[2,32], index: 10, kind: output, shape index: {2}]
  %11 = xla_tuple %s8, %s9, %s10
  %s12 = sld [smem:[#allocation0]]
  $region74: #{tpu_custom_call.1} parent=0
    _
  %s14 = ssub.s32 1, %s12
  %s15 = scalar_select 0, %s14, %s12
  $region1: #{tpu_custom_call.1} parent=0
    #allocation3 [shape = 'u8[4096]{0}', space=vmem, size = 0x1000, scoped, tag = 'input window, operand 0, single buffered']
    #allocation4 [shape = 's32[1]{0}', space=sflag, size = 0x4, scoped, tag = 'scoped memory for tpu_custom_call.1']
    #allocation5 [shape = 's32[1]{0}', space=sflag, size = 0x4, scoped, tag = 'scoped memory for tpu_custom_call.1']
    #allocation6 [shape = 'u8[8192]{0}', space=vmem, size = 0x2000, scoped, tag = 'input window, operand 1, single buffered']
    #allocation7 [shape = 's32[1]{0}', space=sflag, size = 0x4, scoped, tag = 'scoped memory for tpu_custom_call.1']
    #allocation8 [shape = 'u8[8192]{0}', space=vmem, size = 0x2000, scoped, tag = 'input window, operand 2, single buffered']
    #allocation9 [shape = 'u8[8192]{0}', space=vmem, size = 0x2000, scoped, tag = 'input window, operand 4, single buffered']
    #allocation10 [shape = 's32[1]{0}', space=sflag, size = 0x4, scoped, tag = 'scoped memory for tpu_custom_call.1']
    #allocation11 [shape = 'u8[8192]{0}', space=vmem, size = 0x2000, scoped, tag = 'output window, operand 0, single buffered']
    #allocation12 [shape = 'u8[1024]{0}', space=vmem, size = 0x400, scoped, tag = 'output window, operand 1, single buffered']
    #allocation13 [shape = 's32[1]{0}', space=sflag, size = 0x4, scoped, tag = 'scoped memory for tpu_custom_call.1']
    #allocation14 [shape = 'u8[1024]{0}', space=vmem, size = 0x400, scoped, tag = 'output window, operand 2, single buffered']
    %16 = vsyncpa [#allocation4], 0
    %17 = vsyncpa [#allocation7], 0
    %18 = vsyncpa [#allocation10], 0
    %19 = vsyncpa [#allocation5], 0
    %20 = vsyncpa [#allocation13], 0
    // Predicated region
    $region2: #{tpu_custom_call.1} parent=1 // pred_check
      _
    $region3: #{tpu_custom_call.1} parent=1 // pred_check_branch
      %22 = sbr.rel (0) target = $region5
    $region4: #{tpu_custom_call.1} parent=1 // pred_region
      %s24 = ssub.s32 128, 128
      %25 = vsyncadd [#allocation4], %s24
      %s26 = sshll.u32 [#allocation3], 4
      %s27 = int_to_ptr.vmem [resolvable:$true] %s26
      %32 = dma.hbm_to_vmem [thread:$0]  %s0, 128, %s27, [#allocation4], 64, 64, 4
    $region5: #{tpu_custom_call.1} parent=1 // pred_fallthru
      _
    // Predicated region
    $region6: #{tpu_custom_call.1} parent=1 // pred_check
      _
    $region7: #{tpu_custom_call.1} parent=1 // pred_check_branch
      %34 = sbr.rel (0) target = $region9
    $region8: #{tpu_custom_call.1} parent=1 // pred_region
      %s36 = ssub.s32 256, 256
      %37 = vsyncadd [#allocation7], %s36
      %s38 = sshll.u32 [#allocation6], 4
      %s39 = int_to_ptr.vmem [resolvable:$true] %s38
      %44 = dma.hbm_to_vmem [thread:$0]  %s1, 256, %s39, [#allocation7], 64, 64, 4
    $region9: #{tpu_custom_call.1} parent=1 // pred_fallthru
      _
    // Predicated region
    $region10: #{tpu_custom_call.1} parent=1 // pred_check
      _
    $region11: #{tpu_custom_call.1} parent=1 // pred_check_branch
      %46 = sbr.rel (0) target = $region13
    $region12: #{tpu_custom_call.1} parent=1 // pred_region
      %s48 = ssub.s32 256, 256
      %49 = vsyncadd [#allocation7], %s48
      %s50 = sshll.u32 [#allocation8], 4
      %s51 = int_to_ptr.vmem [resolvable:$true] %s50
      %56 = dma.hbm_to_vmem [thread:$0]  %s2, 256, %s51, [#allocation7], 64, 64, 4
    $region13: #{tpu_custom_call.1} parent=1 // pred_fallthru
      _
    // Predicated region
    $region14: #{tpu_custom_call.1} parent=1 // pred_check
      _
    $region15: #{tpu_custom_call.1} parent=1 // pred_check_branch
      %58 = sbr.rel (0) target = $region17
    $region16: #{tpu_custom_call.1} parent=1 // pred_region
      _
    $region17: #{tpu_custom_call.1} parent=1 // pred_fallthru
      _
    // Predicated region
    $region18: #{tpu_custom_call.1} parent=1 // pred_check
      _
    $region19: #{tpu_custom_call.1} parent=1 // pred_check_branch
      %60 = sbr.rel (0) target = $region21
    $region20: #{tpu_custom_call.1} parent=1 // pred_region
      %s62 = ssub.s32 256, 256
      %63 = vsyncadd [#allocation10], %s62
      %s64 = sshll.u32 [#allocation9], 4
      %s65 = int_to_ptr.vmem [resolvable:$true] %s64
      %70 = dma.hbm_to_vmem [thread:$0]  %s4, 256, %s65, [#allocation10], 64, 64, 4
    $region21: #{tpu_custom_call.1} parent=1 // pred_fallthru
      _
    // Predicated region
    $region22: #{tpu_custom_call.1} parent=1 // pred_check
      _
    $region23: #{tpu_custom_call.1} parent=1 // pred_check_branch
      %72 = sbr.rel (0) target = $region25
    $region24: #{tpu_custom_call.1} parent=1 // pred_region
      _
    $region25: #{tpu_custom_call.1} parent=1 // pred_fallthru
      _
    // Predicated region
    $region26: #{tpu_custom_call.1} parent=1 // pred_check
      _
    $region27: #{tpu_custom_call.1} parent=1 // pred_check_branch
      %74 = sbr.rel (0) target = $region29
    $region28: #{tpu_custom_call.1} parent=1 // pred_region
      _
    $region29: #{tpu_custom_call.1} parent=1 // pred_fallthru
      _
    // Predicated region
    $region30: #{tpu_custom_call.1} parent=1 // pred_check
      _
    $region31: #{tpu_custom_call.1} parent=1 // pred_check_branch
      %76 = sbr.rel (0) target = $region33
    $region32: #{tpu_custom_call.1} parent=1 // pred_region
      _
    $region33: #{tpu_custom_call.1} parent=1 // pred_fallthru
      _
    // Predicated region
    $region34: #{tpu_custom_call.1} parent=1 // pred_check
      _
    $region35: #{tpu_custom_call.1} parent=1 // pred_check_branch
      %78 = sbr.rel (0) target = $region37
    $region36: #{tpu_custom_call.1} parent=1 // pred_region
      %79 = dma.done [#allocation4], 128
    $region37: #{tpu_custom_call.1} parent=1 // pred_fallthru
      _
    // Predicated region
    $region38: #{tpu_custom_call.1} parent=1 // pred_check
      _
    $region39: #{tpu_custom_call.1} parent=1 // pred_check_branch
      %81 = sbr.rel (0) target = $region41
    $region40: #{tpu_custom_call.1} parent=1 // pred_region
      %82 = dma.done [#allocation7], 256
    $region41: #{tpu_custom_call.1} parent=1 // pred_fallthru
      _
    // Predicated region
    $region42: #{tpu_custom_call.1} parent=1 // pred_check
      _
    $region43: #{tpu_custom_call.1} parent=1 // pred_check_branch
      %84 = sbr.rel (0) target = $region45
    $region44: #{tpu_custom_call.1} parent=1 // pred_region
      %85 = dma.done [#allocation7], 256
    $region45: #{tpu_custom_call.1} parent=1 // pred_fallthru
      _
    // Predicated region
    $region46: #{tpu_custom_call.1} parent=1 // pred_check
      _
    $region47: #{tpu_custom_call.1} parent=1 // pred_check_branch
      %87 = sbr.rel (0) target = $region49
    $region48: #{tpu_custom_call.1} parent=1 // pred_region
      %88 = dma.done [#allocation10], 256
    $region49: #{tpu_custom_call.1} parent=1 // pred_fallthru
      _
    %v90 = vld [vmem:[#allocation3] sm:$0xf]
    %v91 = vld [vmem:[#allocation3 + $0x4] sm:$0xf]
    %v92 = vld [vmem:[#allocation6] sm:$0xf]
    %v93 = vld [vmem:[#allocation6 + $0x4] sm:$0xf]
    %v94 = vld [vmem:[#allocation6 + $0x8] sm:$0xf]
    %v95 = vld [vmem:[#allocation6 + $0xc] sm:$0xf]
    %v96 = vld [vmem:[%s3] sm:$0x1]
    %v98 = vlaneseq
    %v99 = vshrl.u32 %v98, 7
    %v100 = vsub.s32 0, %v99
    %v101 = vrot.slane %v96, %v100
    %v105 = vunpack.c.l.b16 %v90
    %v106 = vunpack.c.l.b16 %v91
    %v107 = vpack.c.b16 %v106, %v105
    %v112 = vunpack.c.l.b16 %v92
    %v113 = vunpack.c.l.b16 %v93
    %v114 = vunpack.c.l.b16 %v94
    %v115 = vunpack.c.l.b16 %v95
    %v116 = vpack.c.b16 %v113, %v112
    %v117 = vpack.c.b16 %v115, %v114
    %vm120 = vcmask 261120
    %v122 = vsel %vm120, %v107, 0
    %124 = vmatprep.subr.bf16.mxu0 0
    %125 = vmatpush1.bf16.msra.mxu0 0
    %126 = vmatprep.subr.bf16.mxu0 0
    %127 = vmatpush1.bf16.msra.mxu0 0
    %128 = vmatprep.subr.bf16.mxu0 0
    %129 = vmatpush1.bf16.msra.mxu0 0
    %130 = vmatprep.subr.bf16.mxu0 0
    %131 = vmatpush1.bf16.msra.mxu0 0
    %132 = vmatprep.subr.bf16.mxu0 0
    %133 = vmatpush1.bf16.msra.mxu0 0
    %134 = vmatprep.subr.bf16.mxu0 0
    %135 = vmatpush1.bf16.msra.mxu0 0
    %136 = vmatprep.subr.bf16.mxu0 0
    %137 = vmatpush1.bf16.msra.mxu0 %v117
    %138 = vmatprep.subr.bf16.mxu0 0
    %139 = vmatpush1.bf16.msra.mxu0 %v116
    %140 = vmatprep.subr.bf16.mxu0 0
    %141 = vmatpush2.bf16.msra.mxu0 0
    %142 = vmatprep.subr.bf16.mxu0 0
    %143 = vmatpush2.bf16.msra.mxu0 0
    %144 = vmatprep.subr.bf16.mxu0 0
    %145 = vmatpush2.bf16.msra.mxu0 0
    %146 = vmatprep.subr.bf16.mxu0 0
    %147 = vmatpush2.bf16.msra.mxu0 0
    %148 = vmatprep.subr.bf16.mxu0 0
    %149 = vmatpush2.bf16.msra.mxu0 0
    %150 = vmatprep.subr.bf16.mxu0 0
    %151 = vmatpush2.bf16.msra.mxu0 0
    %152 = vmatprep.subr.bf16.mxu0 0
    %153 = vmatpush2.bf16.msra.mxu0 0
    %154 = vmatprep.subr.bf16.mxu0 0
    %155 = vmatpush2.bf16.msra.mxu0 0
    %156 = vmatprep.mubr.bf16.mxu0 0
    %157 = vmatmul.mubr.bf16.gmra.mxu0 %v122
    %v158 = vpop.f32.mrf.mxu0
    %v159 = vadd.f32 %v101, %v158
    %v160 = vpop.f32.mrf.mxu0
    %v161 = vpop.f32.mrf.mxu0
    %v162 = vadd.f32 %v101, %v161
    %v163 = vpop.f32.mrf.mxu0
    %164 = vdwg.mxu0
    %v165 = vld [vmem:[#allocation8] sm:$0xf]
    %v166 = vld [vmem:[#allocation8 + $0x4] sm:$0xf]
    %v167 = vld [vmem:[#allocation8 + $0x8] sm:$0xf]
    %v168 = vld [vmem:[#allocation8 + $0xc] sm:$0xf]
    %v169 = vld [vmem:[%s6] sm:$0x3]
    %v170 = vld [vmem:[%s7] sm:$0x3]
    %v171 = vpack.c.bf16 %v169, %v169
    %v176 = vunpack.c.l.b16 %v165
    %v177 = vunpack.c.l.b16 %v166
    %v178 = vunpack.c.l.b16 %v167
    %v179 = vunpack.c.l.b16 %v168
    %v180 = vpack.c.b16 %v177, %v176
    %v181 = vpack.c.b16 %v179, %v178
    %v185 = vsel %vm120, %v171, 0
    %187 = vmatprep.subr.bf16.mxu0 0
    %188 = vmatpush1.bf16.msra.mxu0 0
    %189 = vmatprep.subr.bf16.mxu0 0
    %190 = vmatpush1.bf16.msra.mxu0 0
    %191 = vmatprep.subr.bf16.mxu0 0
    %192 = vmatpush1.bf16.msra.mxu0 0
    %193 = vmatprep.subr.bf16.mxu0 0
    %194 = vmatpush1.bf16.msra.mxu0 0
    %195 = vmatprep.subr.bf16.mxu0 0
    %196 = vmatpush1.bf16.msra.mxu0 0
    %197 = vmatprep.subr.bf16.mxu0 0
    %198 = vmatpush1.bf16.msra.mxu0 0
    %199 = vmatprep.subr.bf16.mxu0 0
    %200 = vmatpush1.bf16.msra.mxu0 %v181
    %201 = vmatprep.subr.bf16.mxu0 0
    %202 = vmatpush1.bf16.msra.mxu0 %v180
    %203 = vmatprep.subr.bf16.mxu0 0
    %204 = vmatpush2.bf16.msra.mxu0 0
    %205 = vmatprep.subr.bf16.mxu0 0
    %206 = vmatpush2.bf16.msra.mxu0 0
    %207 = vmatprep.subr.bf16.mxu0 0
    %208 = vmatpush2.bf16.msra.mxu0 0
    %209 = vmatprep.subr.bf16.mxu0 0
    %210 = vmatpush2.bf16.msra.mxu0 0
    %211 = vmatprep.subr.bf16.mxu0 0
    %212 = vmatpush2.bf16.msra.mxu0 0
    %213 = vmatprep.subr.bf16.mxu0 0
    %214 = vmatpush2.bf16.msra.mxu0 0
    %215 = vmatprep.subr.bf16.mxu0 0
    %216 = vmatpush2.bf16.msra.mxu0 0
    %217 = vmatprep.subr.bf16.mxu0 0
    %218 = vmatpush2.bf16.msra.mxu0 0
    %219 = vmatprep.mubr.bf16.mxu0 0
    %220 = vmatmul.mubr.bf16.gmra.mxu0 %v185
    %v221 = vpop.f32.mrf.mxu0
    %v222 = vadd.f32 0.0, %v221
    %v223 = vpop.f32.mrf.mxu0
    %v224 = vpop.f32.mrf.mxu0
    %v225 = vpop.f32.mrf.mxu0
    %226 = vdwg.mxu0
    %v227 = vadd.f32 %v159, %v222
    %v228 = vxor.u32 %v227, 2147483648
    %v229 = vmul.f32 %v228, 1.442695
    %v230 = vpow.pop %v229
    %v231 = vadd.f32 %v230, 1.0
    %v232 = vrcp.pop %v231
    %v233 = vmul.f32 1.0, %v232
    %v234 = vtanh.pop %v227
    %236 = vrot.lane.b32.xlu0 %v170, 32
    %v237 = vpop.permute.xlu0 %236
    %v239 = vmul.f32 %v233, %v237
    %241 = vrot.lane.b32.xlu0 %v234, 64
    %v242 = vpop.permute.xlu0 %241
    %v244 = vmul.f32 %v233, %v242
    %246 = vrot.lane.b32.xlu0 %v244, 32
    %v247 = vpop.permute.xlu0 %246
    %v249 = vadd.f32 %v239, %v247
    %v250 = vtanh.pop %v249
    %252 = vrot.lane.b32.xlu0 %v250, 64
    %v253 = vpop.permute.xlu0 %252
    %v255 = vmul.f32 %v233, %v253
    %257 = vrot.lane.b32.xlu0 %v255, 32
    %v258 = vpop.permute.xlu0 %257
    %vm260 = vcmask 254976
    %261 = vst.msk [vmem:[#allocation2] sm:$0x3] %vm260, %v258
    %v262 = vpack.c.bf16 %v255, %v255
    %264 = vrot.lane.b32.xlu0 %v262, 32
    %v265 = vpop.permute.xlu0 %264
    %v267 = vsel %vm120, %v265, 0
    %269 = vmatprep.subr.bf16.mxu0 0
    %270 = vmatpush1.bf16.msra.mxu0 0
    %271 = vmatprep.subr.bf16.mxu0 0
    %272 = vmatpush1.bf16.msra.mxu0 0
    %273 = vmatprep.subr.bf16.mxu0 0
    %274 = vmatpush1.bf16.msra.mxu0 0
    %275 = vmatprep.subr.bf16.mxu0 0
    %276 = vmatpush1.bf16.msra.mxu0 0
    %277 = vmatprep.subr.bf16.mxu0 0
    %278 = vmatpush1.bf16.msra.mxu0 0
    %279 = vmatprep.subr.bf16.mxu0 0
    %280 = vmatpush1.bf16.msra.mxu0 0
    %281 = vmatprep.subr.bf16.mxu0 0
    %282 = vmatpush1.bf16.msra.mxu0 %v181
    %283 = vmatprep.subr.bf16.mxu0 0
    %284 = vmatpush1.bf16.msra.mxu0 %v180
    %285 = vmatprep.subr.bf16.mxu0 0
    %286 = vmatpush2.bf16.msra.mxu0 0
    %287 = vmatprep.subr.bf16.mxu0 0
    %288 = vmatpush2.bf16.msra.mxu0 0
    %289 = vmatprep.subr.bf16.mxu0 0
    %290 = vmatpush2.bf16.msra.mxu0 0
    %291 = vmatprep.subr.bf16.mxu0 0
    %292 = vmatpush2.bf16.msra.mxu0 0
    %293 = vmatprep.subr.bf16.mxu0 0
    %294 = vmatpush2.bf16.msra.mxu0 0
    %295 = vmatprep.subr.bf16.mxu0 0
    %296 = vmatpush2.bf16.msra.mxu0 0
    %297 = vmatprep.subr.bf16.mxu0 0
    %298 = vmatpush2.bf16.msra.mxu0 0
    %299 = vmatprep.subr.bf16.mxu0 0
    %300 = vmatpush2.bf16.msra.mxu0 0
    %301 = vmatprep.mubr.bf16.mxu0 0
    %302 = vmatmul.mubr.bf16.gmra.mxu0 %v267
    %v303 = vpop.f32.mrf.mxu0
    %v304 = vadd.f32 0.0, %v303
    %v305 = vpop.f32.mrf.mxu0
    %v306 = vpop.f32.mrf.mxu0
    %v307 = vpop.f32.mrf.mxu0
    %308 = vdwg.mxu0
    %v310 = vrot.slane %v304, 6
    %v312 = vadd.f32 %v159, %v310
    %v313 = vxor.u32 %v312, 2147483648
    %v314 = vmul.f32 %v313, 1.442695
    %v315 = vpow.pop %v314
    %v316 = vadd.f32 %v315, 1.0
    %v317 = vrcp.pop %v316
    %v318 = vmul.f32 1.0, %v317
    %v319 = vtanh.pop %v312
    %v321 = vrot.slane %v249, 6
    %v323 = vmul.f32 %v318, %v321
    %325 = vrot.lane.b32.xlu0 %v319, 64
    %v326 = vpop.permute.xlu0 %325
    %v328 = vmul.f32 %v318, %v326
    %330 = vrot.lane.b32.xlu0 %v328, 32
    %v331 = vpop.permute.xlu0 %330
    %v333 = vadd.f32 %v323, %v331
    %v334 = vtanh.pop %v333
    %336 = vrot.lane.b32.xlu0 %v334, 64
    %v337 = vpop.permute.xlu0 %336
    %v339 = vmul.f32 %v318, %v337
    %341 = vrot.lane.b32.xlu0 %v339, 32
    %v342 = vpop.permute.xlu0 %341
    %vm344 = vcmask 257026
    %345 = vst.msk [vmem:[#allocation2] sm:$0xc] %vm344, %v342
    %v346 = vpack.c.bf16 %v339, %v339
    %v348 = vrot.slane %v346, 1
    %349 = vrot.lane.b32.xlu0 %v348, 32
    %v350 = vpop.permute.xlu0 %349
    %v352 = vsel %vm120, %v350, 0
    %354 = vmatprep.subr.bf16.mxu0 0
    %355 = vmatpush1.bf16.msra.mxu0 0
    %356 = vmatprep.subr.bf16.mxu0 0
    %357 = vmatpush1.bf16.msra.mxu0 0
    %358 = vmatprep.subr.bf16.mxu0 0
    %359 = vmatpush1.bf16.msra.mxu0 0
    %360 = vmatprep.subr.bf16.mxu0 0
    %361 = vmatpush1.bf16.msra.mxu0 0
    %362 = vmatprep.subr.bf16.mxu0 0
    %363 = vmatpush1.bf16.msra.mxu0 0
    %364 = vmatprep.subr.bf16.mxu0 0
    %365 = vmatpush1.bf16.msra.mxu0 0
    %366 = vmatprep.subr.bf16.mxu0 0
    %367 = vmatpush1.bf16.msra.mxu0 %v181
    %368 = vmatprep.subr.bf16.mxu0 0
    %369 = vmatpush1.bf16.msra.mxu0 %v180
    %370 = vmatprep.subr.bf16.mxu0 0
    %371 = vmatpush2.bf16.msra.mxu0 0
    %372 = vmatprep.subr.bf16.mxu0 0
    %373 = vmatpush2.bf16.msra.mxu0 0
    %374 = vmatprep.subr.bf16.mxu0 0
    %375 = vmatpush2.bf16.msra.mxu0 0
    %376 = vmatprep.subr.bf16.mxu0 0
    %377 = vmatpush2.bf16.msra.mxu0 0
    %378 = vmatprep.subr.bf16.mxu0 0
    %379 = vmatpush2.bf16.msra.mxu0 0
    %380 = vmatprep.subr.bf16.mxu0 0
    %381 = vmatpush2.bf16.msra.mxu0 0
    %382 = vmatprep.subr.bf16.mxu0 0
    %383 = vmatpush2.bf16.msra.mxu0 0
    %384 = vmatprep.subr.bf16.mxu0 0
    %385 = vmatpush2.bf16.msra.mxu0 0
    %386 = vmatprep.mubr.bf16.mxu0 0
    %387 = vmatmul.mubr.bf16.gmra.mxu0 %v352
    %v388 = vpop.f32.mrf.mxu0
    %v389 = vadd.f32 0.0, %v388
    %v390 = vpop.f32.mrf.mxu0
    %v391 = vpop.f32.mrf.mxu0
    %v392 = vpop.f32.mrf.mxu0
    %393 = vdwg.mxu0
    %v395 = vrot.slane %v389, 4
    %v397 = vadd.f32 %v159, %v395
    %v398 = vxor.u32 %v397, 2147483648
    %v399 = vmul.f32 %v398, 1.442695
    %v400 = vpow.pop %v399
    %v401 = vadd.f32 %v400, 1.0
    %v402 = vrcp.pop %v401
    %v403 = vmul.f32 1.0, %v402
    %v404 = vtanh.pop %v397
    %v406 = vrot.slane %v333, 6
    %v408 = vmul.f32 %v403, %v406
    %410 = vrot.lane.b32.xlu0 %v404, 64
    %v411 = vpop.permute.xlu0 %410
    %v413 = vmul.f32 %v403, %v411
    %415 = vrot.lane.b32.xlu0 %v413, 32
    %v416 = vpop.permute.xlu0 %415
    %v418 = vadd.f32 %v408, %v416
    %v419 = vtanh.pop %v418
    %421 = vrot.lane.b32.xlu0 %v419, 64
    %v422 = vpop.permute.xlu0 %421
    %v424 = vmul.f32 %v403, %v422
    %426 = vrot.lane.b32.xlu0 %v424, 32
    %v427 = vpop.permute.xlu0 %426
    %vm429 = vcmask 259076
    %430 = vst.msk [vmem:[#allocation2] sm:$0x30] %vm429, %v427
    %v431 = vpack.c.bf16 %v424, %v424
    %v433 = vrot.slane %v431, 2
    %434 = vrot.lane.b32.xlu0 %v433, 32
    %v435 = vpop.permute.xlu0 %434
    %v437 = vsel %vm120, %v435, 0
    %439 = vmatprep.subr.bf16.mxu0 0
    %440 = vmatpush1.bf16.msra.mxu0 0
    %441 = vmatprep.subr.bf16.mxu0 0
    %442 = vmatpush1.bf16.msra.mxu0 0
    %443 = vmatprep.subr.bf16.mxu0 0
    %444 = vmatpush1.bf16.msra.mxu0 0
    %445 = vmatprep.subr.bf16.mxu0 0
    %446 = vmatpush1.bf16.msra.mxu0 0
    %447 = vmatprep.subr.bf16.mxu0 0
    %448 = vmatpush1.bf16.msra.mxu0 0
    %449 = vmatprep.subr.bf16.mxu0 0
    %450 = vmatpush1.bf16.msra.mxu0 0
    %451 = vmatprep.subr.bf16.mxu0 0
    %452 = vmatpush1.bf16.msra.mxu0 %v181
    %453 = vmatprep.subr.bf16.mxu0 0
    %454 = vmatpush1.bf16.msra.mxu0 %v180
    %455 = vmatprep.subr.bf16.mxu0 0
    %456 = vmatpush2.bf16.msra.mxu0 0
    %457 = vmatprep.subr.bf16.mxu0 0
    %458 = vmatpush2.bf16.msra.mxu0 0
    %459 = vmatprep.subr.bf16.mxu0 0
    %460 = vmatpush2.bf16.msra.mxu0 0
    %461 = vmatprep.subr.bf16.mxu0 0
    %462 = vmatpush2.bf16.msra.mxu0 0
    %463 = vmatprep.subr.bf16.mxu0 0
    %464 = vmatpush2.bf16.msra.mxu0 0
    %465 = vmatprep.subr.bf16.mxu0 0
    %466 = vmatpush2.bf16.msra.mxu0 0
    %467 = vmatprep.subr.bf16.mxu0 0
    %468 = vmatpush2.bf16.msra.mxu0 0
    %469 = vmatprep.subr.bf16.mxu0 0
    %470 = vmatpush2.bf16.msra.mxu0 0
    %471 = vmatprep.mubr.bf16.mxu0 0
    %472 = vmatmul.mubr.bf16.gmra.mxu0 %v437
    %v473 = vpop.f32.mrf.mxu0
    %v474 = vadd.f32 0.0, %v473
    %v475 = vpop.f32.mrf.mxu0
    %v476 = vpop.f32.mrf.mxu0
    %v477 = vpop.f32.mrf.mxu0
    %478 = vdwg.mxu0
    %v480 = vrot.slane %v474, 2
    %v482 = vadd.f32 %v159, %v480
    %v483 = vxor.u32 %v482, 2147483648
    %v484 = vmul.f32 %v483, 1.442695
    %v485 = vpow.pop %v484
    %v486 = vadd.f32 %v485, 1.0
    %v487 = vrcp.pop %v486
    %v488 = vmul.f32 1.0, %v487
    %v489 = vtanh.pop %v482
    %v491 = vrot.slane %v418, 6
    %v493 = vmul.f32 %v488, %v491
    %495 = vrot.lane.b32.xlu0 %v489, 64
    %v496 = vpop.permute.xlu0 %495
    %v498 = vmul.f32 %v488, %v496
    %500 = vrot.lane.b32.xlu0 %v498, 32
    %v501 = vpop.permute.xlu0 %500
    %v503 = vadd.f32 %v493, %v501
    %v504 = vtanh.pop %v503
    %506 = vrot.lane.b32.xlu0 %v504, 64
    %v507 = vpop.permute.xlu0 %506
    %v509 = vmul.f32 %v488, %v507
    %511 = vrot.lane.b32.xlu0 %v509, 32
    %v512 = vpop.permute.xlu0 %511
    %vm514 = vcmask 261126
    %515 = vst.msk [vmem:[#allocation2] sm:$0xc0] %vm514, %v512
    %v516 = vpack.c.bf16 %v509, %v509
    %v518 = vrot.slane %v516, 3
    %519 = vrot.lane.b32.xlu0 %v518, 32
    %v520 = vpop.permute.xlu0 %519
    %v522 = vsel %vm120, %v520, 0
    %524 = vmatprep.subr.bf16.mxu0 0
    %525 = vmatpush1.bf16.msra.mxu0 0
    %526 = vmatprep.subr.bf16.mxu0 0
    %527 = vmatpush1.bf16.msra.mxu0 0
    %528 = vmatprep.subr.bf16.mxu0 0
    %529 = vmatpush1.bf16.msra.mxu0 0
    %530 = vmatprep.subr.bf16.mxu0 0
    %531 = vmatpush1.bf16.msra.mxu0 0
    %532 = vmatprep.subr.bf16.mxu0 0
    %533 = vmatpush1.bf16.msra.mxu0 0
    %534 = vmatprep.subr.bf16.mxu0 0
    %535 = vmatpush1.bf16.msra.mxu0 0
    %536 = vmatprep.subr.bf16.mxu0 0
    %537 = vmatpush1.bf16.msra.mxu0 %v181
    %538 = vmatprep.subr.bf16.mxu0 0
    %539 = vmatpush1.bf16.msra.mxu0 %v180
    %540 = vmatprep.subr.bf16.mxu0 0
    %541 = vmatpush2.bf16.msra.mxu0 0
    %542 = vmatprep.subr.bf16.mxu0 0
    %543 = vmatpush2.bf16.msra.mxu0 0
    %544 = vmatprep.subr.bf16.mxu0 0
    %545 = vmatpush2.bf16.msra.mxu0 0
    %546 = vmatprep.subr.bf16.mxu0 0
    %547 = vmatpush2.bf16.msra.mxu0 0
    %548 = vmatprep.subr.bf16.mxu0 0
    %549 = vmatpush2.bf16.msra.mxu0 0
    %550 = vmatprep.subr.bf16.mxu0 0
    %551 = vmatpush2.bf16.msra.mxu0 0
    %552 = vmatprep.subr.bf16.mxu0 0
    %553 = vmatpush2.bf16.msra.mxu0 0
    %554 = vmatprep.subr.bf16.mxu0 0
    %555 = vmatpush2.bf16.msra.mxu0 0
    %556 = vmatprep.mubr.bf16.mxu0 0
    %557 = vmatmul.mubr.bf16.gmra.mxu0 %v522
    %v558 = vpop.f32.mrf.mxu0
    %v559 = vadd.f32 0.0, %v558
    %v560 = vpop.f32.mrf.mxu0
    %v561 = vpop.f32.mrf.mxu0
    %v562 = vpop.f32.mrf.mxu0
    %563 = vdwg.mxu0
    %v564 = vadd.f32 %v162, %v559
    %v565 = vxor.u32 %v564, 2147483648
    %v566 = vmul.f32 %v565, 1.442695
    %v567 = vpow.pop %v566
    %v568 = vadd.f32 %v567, 1.0
    %v569 = vrcp.pop %v568
    %v570 = vmul.f32 1.0, %v569
    %v571 = vtanh.pop %v564
    %v573 = vrot.slane %v503, 6
    %v575 = vmul.f32 %v570, %v573
    %577 = vrot.lane.b32.xlu0 %v571, 64
    %v578 = vpop.permute.xlu0 %577
    %v580 = vmul.f32 %v570, %v578
    %582 = vrot.lane.b32.xlu0 %v580, 32
    %v583 = vpop.permute.xlu0 %582
    %v585 = vadd.f32 %v575, %v583
    %v586 = vtanh.pop %v585
    %588 = vrot.lane.b32.xlu0 %v586, 64
    %v589 = vpop.permute.xlu0 %588
    %v591 = vmul.f32 %v570, %v589
    %593 = vrot.lane.b32.xlu0 %v591, 32
    %v594 = vpop.permute.xlu0 %593
    %596 = vst.msk [vmem:[#allocation2 + $0x8] sm:$0x3] %vm260, %v594
    %v597 = vpack.c.bf16 %v591, %v591
    %599 = vrot.lane.b32.xlu0 %v597, 32
    %v600 = vpop.permute.xlu0 %599
    %v602 = vsel %vm120, %v600, 0
    %604 = vmatprep.subr.bf16.mxu0 0
    %605 = vmatpush1.bf16.msra.mxu0 0
    %606 = vmatprep.subr.bf16.mxu0 0
    %607 = vmatpush1.bf16.msra.mxu0 0
    %608 = vmatprep.subr.bf16.mxu0 0
    %609 = vmatpush1.bf16.msra.mxu0 0
    %610 = vmatprep.subr.bf16.mxu0 0
    %611 = vmatpush1.bf16.msra.mxu0 0
    %612 = vmatprep.subr.bf16.mxu0 0
    %613 = vmatpush1.bf16.msra.mxu0 0
    %614 = vmatprep.subr.bf16.mxu0 0
    %615 = vmatpush1.bf16.msra.mxu0 0
    %616 = vmatprep.subr.bf16.mxu0 0
    %617 = vmatpush1.bf16.msra.mxu0 %v181
    %618 = vmatprep.subr.bf16.mxu0 0
    %619 = vmatpush1.bf16.msra.mxu0 %v180
    %620 = vmatprep.subr.bf16.mxu0 0
    %621 = vmatpush2.bf16.msra.mxu0 0
    %622 = vmatprep.subr.bf16.mxu0 0
    %623 = vmatpush2.bf16.msra.mxu0 0
    %624 = vmatprep.subr.bf16.mxu0 0
    %625 = vmatpush2.bf16.msra.mxu0 0
    %626 = vmatprep.subr.bf16.mxu0 0
    %627 = vmatpush2.bf16.msra.mxu0 0
    %628 = vmatprep.subr.bf16.mxu0 0
    %629 = vmatpush2.bf16.msra.mxu0 0
    %630 = vmatprep.subr.bf16.mxu0 0
    %631 = vmatpush2.bf16.msra.mxu0 0
    %632 = vmatprep.subr.bf16.mxu0 0
    %633 = vmatpush2.bf16.msra.mxu0 0
    %634 = vmatprep.subr.bf16.mxu0 0
    %635 = vmatpush2.bf16.msra.mxu0 0
    %636 = vmatprep.mubr.bf16.mxu0 0
    %637 = vmatmul.mubr.bf16.gmra.mxu0 %v602
    %v638 = vpop.f32.mrf.mxu0
    %v639 = vadd.f32 0.0, %v638
    %v640 = vpop.f32.mrf.mxu0
    %v641 = vpop.f32.mrf.mxu0
    %v642 = vpop.f32.mrf.mxu0
    %643 = vdwg.mxu0
    %v645 = vrot.slane %v639, 6
    %v647 = vadd.f32 %v162, %v645
    %v648 = vxor.u32 %v647, 2147483648
    %v649 = vmul.f32 %v648, 1.442695
    %v650 = vpow.pop %v649
    %v651 = vadd.f32 %v650, 1.0
    %v652 = vrcp.pop %v651
    %v653 = vmul.f32 1.0, %v652
    %v654 = vtanh.pop %v647
    %v656 = vrot.slane %v585, 6
    %v658 = vmul.f32 %v653, %v656
    %660 = vrot.lane.b32.xlu0 %v654, 64
    %v661 = vpop.permute.xlu0 %660
    %v663 = vmul.f32 %v653, %v661
    %665 = vrot.lane.b32.xlu0 %v663, 32
    %v666 = vpop.permute.xlu0 %665
    %v668 = vadd.f32 %v658, %v666
    %v669 = vtanh.pop %v668
    %671 = vrot.lane.b32.xlu0 %v669, 64
    %v672 = vpop.permute.xlu0 %671
    %v674 = vmul.f32 %v653, %v672
    %676 = vrot.lane.b32.xlu0 %v674, 32
    %v677 = vpop.permute.xlu0 %676
    %679 = vst.msk [vmem:[#allocation2 + $0x8] sm:$0xc] %vm344, %v677
    %v680 = vpack.c.bf16 %v674, %v674
    %v682 = vrot.slane %v680, 1
    %683 = vrot.lane.b32.xlu0 %v682, 32
    %v684 = vpop.permute.xlu0 %683
    %v686 = vsel %vm120, %v684, 0
    %688 = vmatprep.subr.bf16.mxu0 0
    %689 = vmatpush1.bf16.msra.mxu0 0
    %690 = vmatprep.subr.bf16.mxu0 0
    %691 = vmatpush1.bf16.msra.mxu0 0
    %692 = vmatprep.subr.bf16.mxu0 0
    %693 = vmatpush1.bf16.msra.mxu0 0
    %694 = vmatprep.subr.bf16.mxu0 0
    %695 = vmatpush1.bf16.msra.mxu0 0
    %696 = vmatprep.subr.bf16.mxu0 0
    %697 = vmatpush1.bf16.msra.mxu0 0
    %698 = vmatprep.subr.bf16.mxu0 0
    %699 = vmatpush1.bf16.msra.mxu0 0
    %700 = vmatprep.subr.bf16.mxu0 0
    %701 = vmatpush1.bf16.msra.mxu0 %v181
    %702 = vmatprep.subr.bf16.mxu0 0
    %703 = vmatpush1.bf16.msra.mxu0 %v180
    %704 = vmatprep.subr.bf16.mxu0 0
    %705 = vmatpush2.bf16.msra.mxu0 0
    %706 = vmatprep.subr.bf16.mxu0 0
    %707 = vmatpush2.bf16.msra.mxu0 0
    %708 = vmatprep.subr.bf16.mxu0 0
    %709 = vmatpush2.bf16.msra.mxu0 0
    %710 = vmatprep.subr.bf16.mxu0 0
    %711 = vmatpush2.bf16.msra.mxu0 0
    %712 = vmatprep.subr.bf16.mxu0 0
    %713 = vmatpush2.bf16.msra.mxu0 0
    %714 = vmatprep.subr.bf16.mxu0 0
    %715 = vmatpush2.bf16.msra.mxu0 0
    %716 = vmatprep.subr.bf16.mxu0 0
    %717 = vmatpush2.bf16.msra.mxu0 0
    %718 = vmatprep.subr.bf16.mxu0 0
    %719 = vmatpush2.bf16.msra.mxu0 0
    %720 = vmatprep.mubr.bf16.mxu0 0
    %721 = vmatmul.mubr.bf16.gmra.mxu0 %v686
    %v722 = vpop.f32.mrf.mxu0
    %v723 = vadd.f32 0.0, %v722
    %v724 = vpop.f32.mrf.mxu0
    %v725 = vpop.f32.mrf.mxu0
    %v726 = vpop.f32.mrf.mxu0
    %727 = vdwg.mxu0
    %v729 = vrot.slane %v723, 4
    %v731 = vadd.f32 %v162, %v729
    %v732 = vxor.u32 %v731, 2147483648
    %v733 = vmul.f32 %v732, 1.442695
    %v734 = vpow.pop %v733
    %v735 = vadd.f32 %v734, 1.0
    %v736 = vrcp.pop %v735
    %v737 = vmul.f32 1.0, %v736
    %v738 = vtanh.pop %v731
    %v740 = vrot.slane %v668, 6
    %v742 = vmul.f32 %v737, %v740
    %744 = vrot.lane.b32.xlu0 %v738, 64
    %v745 = vpop.permute.xlu0 %744
    %v747 = vmul.f32 %v737, %v745
    %749 = vrot.lane.b32.xlu0 %v747, 32
    %v750 = vpop.permute.xlu0 %749
    %v752 = vadd.f32 %v742, %v750
    %v753 = vtanh.pop %v752
    %755 = vrot.lane.b32.xlu0 %v753, 64
    %v756 = vpop.permute.xlu0 %755
    %v758 = vmul.f32 %v737, %v756
    %760 = vrot.lane.b32.xlu0 %v758, 32
    %v761 = vpop.permute.xlu0 %760
    %763 = vst.msk [vmem:[#allocation2 + $0x8] sm:$0x30] %vm429, %v761
    %v764 = vpack.c.bf16 %v758, %v758
    %v766 = vrot.slane %v764, 2
    %767 = vrot.lane.b32.xlu0 %v766, 32
    %v768 = vpop.permute.xlu0 %767
    %v770 = vsel %vm120, %v768, 0
    %772 = vmatprep.subr.bf16.mxu0 0
    %773 = vmatpush1.bf16.msra.mxu0 0
    %774 = vmatprep.subr.bf16.mxu0 0
    %775 = vmatpush1.bf16.msra.mxu0 0
    %776 = vmatprep.subr.bf16.mxu0 0
    %777 = vmatpush1.bf16.msra.mxu0 0
    %778 = vmatprep.subr.bf16.mxu0 0
    %779 = vmatpush1.bf16.msra.mxu0 0
    %780 = vmatprep.subr.bf16.mxu0 0
    %781 = vmatpush1.bf16.msra.mxu0 0
    %782 = vmatprep.subr.bf16.mxu0 0
    %783 = vmatpush1.bf16.msra.mxu0 0
    %784 = vmatprep.subr.bf16.mxu0 0
    %785 = vmatpush1.bf16.msra.mxu0 %v181
    %786 = vmatprep.subr.bf16.mxu0 0
    %787 = vmatpush1.bf16.msra.mxu0 %v180
    %788 = vmatprep.subr.bf16.mxu0 0
    %789 = vmatpush2.bf16.msra.mxu0 0
    %790 = vmatprep.subr.bf16.mxu0 0
    %791 = vmatpush2.bf16.msra.mxu0 0
    %792 = vmatprep.subr.bf16.mxu0 0
    %793 = vmatpush2.bf16.msra.mxu0 0
    %794 = vmatprep.subr.bf16.mxu0 0
    %795 = vmatpush2.bf16.msra.mxu0 0
    %796 = vmatprep.subr.bf16.mxu0 0
    %797 = vmatpush2.bf16.msra.mxu0 0
    %798 = vmatprep.subr.bf16.mxu0 0
    %799 = vmatpush2.bf16.msra.mxu0 0
    %800 = vmatprep.subr.bf16.mxu0 0
    %801 = vmatpush2.bf16.msra.mxu0 0
    %802 = vmatprep.subr.bf16.mxu0 0
    %803 = vmatpush2.bf16.msra.mxu0 0
    %804 = vmatprep.mubr.bf16.mxu0 0
    %805 = vmatmul.mubr.bf16.gmra.mxu0 %v770
    %v806 = vpop.f32.mrf.mxu0
    %v807 = vadd.f32 0.0, %v806
    %v808 = vpop.f32.mrf.mxu0
    %v809 = vpop.f32.mrf.mxu0
    %v810 = vpop.f32.mrf.mxu0
    %811 = vdwg.mxu0
    %v813 = vrot.slane %v807, 2
    %v815 = vadd.f32 %v162, %v813
    %v816 = vxor.u32 %v815, 2147483648
    %v817 = vmul.f32 %v816, 1.442695
    %v818 = vpow.pop %v817
    %v819 = vadd.f32 %v818, 1.0
    %v820 = vrcp.pop %v819
    %v821 = vmul.f32 1.0, %v820
    %v822 = vtanh.pop %v815
    %v824 = vrot.slane %v752, 6
    %v826 = vmul.f32 %v821, %v824
    %828 = vrot.lane.b32.xlu0 %v822, 64
    %v829 = vpop.permute.xlu0 %828
    %v831 = vmul.f32 %v821, %v829
    %833 = vrot.lane.b32.xlu0 %v831, 32
    %v834 = vpop.permute.xlu0 %833
    %v836 = vadd.f32 %v826, %v834
    %v837 = vtanh.pop %v836
    %839 = vrot.lane.b32.xlu0 %v837, 64
    %v840 = vpop.permute.xlu0 %839
    %v842 = vmul.f32 %v821, %v840
    %844 = vrot.lane.b32.xlu0 %v842, 32
    %v845 = vpop.permute.xlu0 %844
    %847 = vst.msk [vmem:[#allocation2 + $0x8] sm:$0xc0] %vm514, %v845
    %848 = vst.msk [vmem:[#allocation12 - $0x6] sm:$0xc0] %vm514, %v845
    %850 = vrot.lane.b32.xlu0 %v836, 96
    %v851 = vpop.permute.xlu0 %850
    %853 = vst.msk [vmem:[#allocation14 - $0x6] sm:$0xc0] %vm514, %v851
    %v854 = vld [vmem:[#allocation2] sm:$0xff]
    %v855 = vld [vmem:[#allocation2 + $0x8] sm:$0xff]
    %v856 = vpack.c.bf16 %v855, %v854
    %v857 = vld [vmem:[#allocation9] sm:$0xf]
    %v858 = vld [vmem:[#allocation9 + $0x4] sm:$0xf]
    %v859 = vld [vmem:[#allocation9 + $0x8] sm:$0xf]
    %v860 = vld [vmem:[#allocation9 + $0xc] sm:$0xf]
    %v861 = vld [vmem:[%s5] sm:$0x1]
    %v863 = vlaneseq
    %v864 = vshrl.u32 %v863, 7
    %v865 = vsub.s32 0, %v864
    %v866 = vrot.slane %v861, %v865
    %v872 = vunpack.c.l.b16 %v857
    %v873 = vunpack.c.l.b16 %v858
    %v874 = vunpack.c.l.b16 %v859
    %v875 = vunpack.c.l.b16 %v860
    %v876 = vpack.c.b16 %v873, %v872
    %v877 = vpack.c.b16 %v875, %v874
    %v881 = vsel %vm120, %v856, 0
    %883 = vmatprep.subr.bf16.mxu0 0
    %884 = vmatpush1.bf16.msra.mxu0 0
    %885 = vmatprep.subr.bf16.mxu0 0
    %886 = vmatpush1.bf16.msra.mxu0 0
    %887 = vmatprep.subr.bf16.mxu0 0
    %888 = vmatpush1.bf16.msra.mxu0 0
    %889 = vmatprep.subr.bf16.mxu0 0
    %890 = vmatpush1.bf16.msra.mxu0 0
    %891 = vmatprep.subr.bf16.mxu0 0
    %892 = vmatpush1.bf16.msra.mxu0 0
    %893 = vmatprep.subr.bf16.mxu0 0
    %894 = vmatpush1.bf16.msra.mxu0 0
    %895 = vmatprep.subr.bf16.mxu0 0
    %896 = vmatpush1.bf16.msra.mxu0 %v877
    %897 = vmatprep.subr.bf16.mxu0 0
    %898 = vmatpush1.bf16.msra.mxu0 %v876
    %899 = vmatprep.subr.bf16.mxu0 0
    %900 = vmatpush2.bf16.msra.mxu0 0
    %901 = vmatprep.subr.bf16.mxu0 0
    %902 = vmatpush2.bf16.msra.mxu0 0
    %903 = vmatprep.subr.bf16.mxu0 0
    %904 = vmatpush2.bf16.msra.mxu0 0
    %905 = vmatprep.subr.bf16.mxu0 0
    %906 = vmatpush2.bf16.msra.mxu0 0
    %907 = vmatprep.subr.bf16.mxu0 0
    %908 = vmatpush2.bf16.msra.mxu0 0
    %909 = vmatprep.subr.bf16.mxu0 0
    %910 = vmatpush2.bf16.msra.mxu0 0
    %911 = vmatprep.subr.bf16.mxu0 0
    %912 = vmatpush2.bf16.msra.mxu0 0
    %913 = vmatprep.subr.bf16.mxu0 0
    %914 = vmatpush2.bf16.msra.mxu0 0
    %915 = vmatprep.mubr.bf16.mxu0 0
    %916 = vmatmul.mubr.bf16.gmra.mxu0 %v881
    %v917 = vpop.f32.mrf.mxu0
    %v918 = vadd.f32 %v866, %v917
    %v919 = vpop.f32.mrf.mxu0
    %v920 = vpop.f32.mrf.mxu0
    %v921 = vadd.f32 %v866, %v920
    %v922 = vpop.f32.mrf.mxu0
    %923 = vdwg.mxu0
    %v924 = vtanh.pop %v918
    %v925 = vtanh.pop %v921
    %926 = vst.msk [vmem:[#allocation11] sm:$0xff] %vm120, %v924
    %927 = vst.msk [vmem:[#allocation11 + $0x8] sm:$0xff] %vm120, %v925
    // Predicated region
    $region50: #{tpu_custom_call.1} parent=1 // pred_check
      _
    $region51: #{tpu_custom_call.1} parent=1 // pred_check_branch
      %929 = sbr.rel (0) target = $region53
    $region52: #{tpu_custom_call.1} parent=1 // pred_region
      %s931 = ssub.s32 256, 256
      %932 = vsyncadd [#allocation5], %s931
      %s933 = sshll.u32 [#allocation11], 4
      %s934 = int_to_ptr.vmem [resolvable:$true] %s933
      %939 = dma.vmem_to_hbm [thread:$0]  %s934, 256, %s8, [#allocation5], 128, 128, 8
    $region53: #{tpu_custom_call.1} parent=1 // pred_fallthru
      _
    // Predicated region
    $region54: #{tpu_custom_call.1} parent=1 // pred_check
      _
    $region55: #{tpu_custom_call.1} parent=1 // pred_check_branch
      %941 = sbr.rel (0) target = $region57
    $region56: #{tpu_custom_call.1} parent=1 // pred_region
      %s943 = ssub.s32 32, 32
      %944 = vsyncadd [#allocation13], %s943
      %s946 = sshll.u32 [#allocation12], 4
      %s947 = int_to_ptr.vmem [resolvable:$true] %s946
      %949 = dma.vmem_to_hbm [thread:$0]  %s947, 32, %s9, [#allocation13]
    $region57: #{tpu_custom_call.1} parent=1 // pred_fallthru
      _
    // Predicated region
    $region58: #{tpu_custom_call.1} parent=1 // pred_check
      _
    $region59: #{tpu_custom_call.1} parent=1 // pred_check_branch
      %951 = sbr.rel (0) target = $region61
    $region60: #{tpu_custom_call.1} parent=1 // pred_region
      %s953 = ssub.s32 32, 32
      %954 = vsyncadd [#allocation13], %s953
      %s956 = sshll.u32 [#allocation14], 4
      %s957 = int_to_ptr.vmem [resolvable:$true] %s956
      %959 = dma.vmem_to_hbm [thread:$0]  %s957, 32, %s10, [#allocation13]
    $region61: #{tpu_custom_call.1} parent=1 // pred_fallthru
      _
    // Predicated region
    $region62: #{tpu_custom_call.1} parent=1 // pred_check
      _
    $region63: #{tpu_custom_call.1} parent=1 // pred_check_branch
      %961 = sbr.rel (0) target = $region65
    $region64: #{tpu_custom_call.1} parent=1 // pred_region
      %962 = dma.done [#allocation5], 256
    $region65: #{tpu_custom_call.1} parent=1 // pred_fallthru
      _
    // Predicated region
    $region66: #{tpu_custom_call.1} parent=1 // pred_check
      _
    $region67: #{tpu_custom_call.1} parent=1 // pred_check_branch
      %964 = sbr.rel (0) target = $region69
    $region68: #{tpu_custom_call.1} parent=1 // pred_region
      %965 = dma.done [#allocation13], 32
    $region69: #{tpu_custom_call.1} parent=1 // pred_fallthru
      _
    // Predicated region
    $region70: #{tpu_custom_call.1} parent=1 // pred_check
      _
    $region71: #{tpu_custom_call.1} parent=1 // pred_check_branch
      %967 = sbr.rel (0) target = $region73
    $region72: #{tpu_custom_call.1} parent=1 // pred_region
      %968 = dma.done [#allocation13], 32
    $region73: #{tpu_custom_call.1} parent=1 // pred_fallthru
      _
    %969 = vsyncpa [#allocation4], 1
    %970 = vsyncpa [#allocation7], 1
    %971 = vsyncpa [#allocation10], 1
    %972 = vsyncpa [#allocation5], 1
    %973 = vsyncpa [#allocation13], 1

</llo_original>
